<compile_context>
chip_gen: v7x
topology: tpu7x:2x2x1
jax: 0.10.0
libtpu: 0.0.40
codegen_flags: <defaults>
</compile_context>

<pallas_src>
import jax
import jax.numpy as jnp
from jax.experimental import pallas as pl
from jax.experimental.pallas import tpu as pltpu


def policy_kernel(x_ref, w1_ref, b1_ref, w2_ref, b2_ref, w3_ref, b3_ref, o_ref):
    x = x_ref[...]                                               # (4, TB)

    # fc1 + ReLU
    h1 = jnp.dot(w1_ref[...], x, preferred_element_type=jnp.float32) + b1_ref[...]
    h1 = jnp.maximum(h1, 0.0)                                    # (24, TB)

    # fc2 + Dropout(p=0.7) + ReLU
    # TODO(synk): dropout is identity (eval semantics); training mode would need
    # pltpu.prng_seed/prng_random_bits masking and 1/(1-p) scaling.
    h2 = jnp.dot(w2_ref[...], h1, preferred_element_type=jnp.float32) + b2_ref[...]
    h2 = jnp.maximum(h2, 0.0)                                    # (36, TB)

    # fc3
    logits = jnp.dot(w3_ref[...], h2, preferred_element_type=jnp.float32) + b3_ref[...]  # (2, TB)

    # 2-class softmax, closed form (numerically stable, no XLU reductions).
    d = logits[0:1, :] - logits[1:2, :]
    p0 = 1.0 / (1.0 + jnp.exp(-d))
    p1 = 1.0 / (1.0 + jnp.exp(d))
    o_ref[0:1, :] = p0.astype(o_ref.dtype)
    o_ref[1:2, :] = p1.astype(o_ref.dtype)


def policy_forward(x, params, *, block_b=512):
    """x: (B, 4) float32 (PyTorch layout). Returns (B, 2) softmax probabilities."""
    w1, b1, w2, b2, w3, b3 = params
    B = x.shape[0]

    # Batch-on-lanes layout: (features, batch); pad batch to a lane-tile multiple.
    xt = x.astype(jnp.float32).T                                 # (4, B)
    tb = min(block_b, max(128, pl.cdiv(B, 128) * 128))           # lane-tile (mult of 128)
    Bp = pl.cdiv(B, tb) * tb
    if Bp != B:
        xt = jnp.pad(xt, ((0, 0), (0, Bp - B)))

    const = lambda a: pl.BlockSpec(a.shape, lambda i: (0, 0))    # grid-invariant resident

    out_t = pl.pallas_call(
        policy_kernel,
        out_shape=jax.ShapeDtypeStruct((2, Bp), jnp.float32),
        grid=(Bp // tb,),
        in_specs=[
            pl.BlockSpec((4, tb), lambda i: (0, i)),             # x tile, lane-dense
            const(w1), const(b1),
            const(w2), const(b2),
            const(w3), const(b3),
        ],
        out_specs=pl.BlockSpec((2, tb), lambda i: (0, i)),       # lane-dense output
        compiler_params=pltpu.CompilerParams(
            dimension_semantics=("parallel",),                   # megacore sharding (v7x)
        ),
    )(xt, w1, b1, w2, b2, w3, b3)

    return out_t[:, :B].T                                        # (B, 2)


def init_params(key):
    """Deterministic init mimicking nn.Linear default (uniform +/- 1/sqrt(fan_in)).

    Weights are (out_features, in_features), biases (out_features, 1) to match the
    batch-on-lanes kernel layout (same storage convention as torch.nn.Linear.weight).
    """
    dims = [(4, 24), (24, 36), (36, 2)]
    params = []
    for i, (fin, fout) in enumerate(dims):
        kw, kb = jax.random.split(jax.random.fold_in(key, i))
        bound = 1.0 / (fin ** 0.5)
        w = jax.random.uniform(kw, (fout, fin), jnp.float32, -bound, bound)
        b = jax.random.uniform(kb, (fout, 1), jnp.float32, -bound, bound)
        params += [w, b]
    return tuple(params)


def policy_ref(x, params):
    """Pure-JAX reference for correctness check (standard (B, F) layout)."""
    w1, b1, w2, b2, w3, b3 = params
    h1 = jnp.maximum(x @ w1.T + b1.T, 0.0)
    h2 = jnp.maximum(h1 @ w2.T + b2.T, 0.0)
    logits = h2 @ w3.T + b3.T
    return jax.nn.softmax(logits, axis=1)


if __name__ == "__main__":
    key = jax.random.PRNGKey(0)
    kx, kp = jax.random.split(key)
    params = init_params(kp)

    # Small latency-style batch.
    B = 8
    x = jax.random.normal(kx, (B, 4), jnp.float32)
    out = jax.block_until_ready(policy_forward(x, params))
    ref = policy_ref(x, params)
    assert out.shape == (B, 2)
    assert jnp.allclose(jnp.sum(out, axis=1), 1.0, atol=1e-5)
    assert jnp.allclose(out, ref, atol=1e-5, rtol=1e-5)

    # Larger, non-multiple-of-128 batch to exercise the tiled grid + padding path.
    B2 = 1000
    x2 = jax.random.normal(jax.random.fold_in(kx, 1), (B2, 4), jnp.float32)
    out2 = jax.block_until_ready(policy_forward(x2, params))
    ref2 = policy_ref(x2, params)
    assert out2.shape == (B2, 2)
    assert jnp.allclose(jnp.sum(out2, axis=1), 1.0, atol=1e-5)
    assert jnp.allclose(out2, ref2, atol=1e-5, rtol=1e-5)

    print("KERNEL_OK")
</pallas_src>

<mosaic_0001>
module attributes {stable_mosaic.version = 11 : i64} {
  func.func @policy_kernel(%arg0: i32, %arg1: memref<4x128xf32, #tpu.memory_space<vmem>>, %arg2: memref<24x4xf32, #tpu.memory_space<vmem>>, %arg3: memref<24x1xf32, #tpu.memory_space<vmem>>, %arg4: memref<36x24xf32, #tpu.memory_space<vmem>>, %arg5: memref<36x1xf32, #tpu.memory_space<vmem>>, %arg6: memref<2x36xf32, #tpu.memory_space<vmem>>, %arg7: memref<2x1xf32, #tpu.memory_space<vmem>>, %arg8: memref<2x128xf32, #tpu.memory_space<vmem>>) attributes {dimension_semantics = [#tpu.dimension_semantics<parallel>], iteration_bounds = array<i64: 1>, scalar_prefetch = 0 : i64, scratch_operands = 0 : i64, tpu.core_type = #tpu.core_type<tc>, window_params = [{transform_indices = @transform_0, window_bounds = array<i64: 4, 128>}, {pipeline_mode = #tpu.pipeline_mode<synchronous>, transform_indices = @transform_1, window_bounds = array<i64: 24, 4>}, {pipeline_mode = #tpu.pipeline_mode<synchronous>, transform_indices = @transform_2, window_bounds = array<i64: 24, 1>}, {pipeline_mode = #tpu.pipeline_mode<synchronous>, transform_indices = @transform_3, window_bounds = array<i64: 36, 24>}, {pipeline_mode = #tpu.pipeline_mode<synchronous>, transform_indices = @transform_4, window_bounds = array<i64: 36, 1>}, {pipeline_mode = #tpu.pipeline_mode<synchronous>, transform_indices = @transform_5, window_bounds = array<i64: 2, 36>}, {pipeline_mode = #tpu.pipeline_mode<synchronous>, transform_indices = @transform_6, window_bounds = array<i64: 2, 1>}, {transform_indices = @transform_7, window_bounds = array<i64: 2, 128>}]} {
    %c0 = arith.constant 0 : index
    %c0_0 = arith.constant 0 : index
    %0 = vector.load %arg1[%c0, %c0_0] : memref<4x128xf32, #tpu.memory_space<vmem>>, vector<4x128xf32>
    %c0_1 = arith.constant 0 : index
    %c0_2 = arith.constant 0 : index
    %1 = vector.load %arg2[%c0_1, %c0_2] : memref<24x4xf32, #tpu.memory_space<vmem>>, vector<24x4xf32>
    %cst = arith.constant dense<0.000000e+00> : vector<24x128xf32>
    %2 = tpu.matmul %1, %0, %cst {dimension_numbers = #tpu.dot_dimension_numbers<[1], [0], [0], [1], [0, 0, 1, 1], [], []>} : vector<24x4xf32>, vector<4x128xf32>, vector<24x128xf32> -> vector<24x128xf32>
    %c0_3 = arith.constant 0 : index
    %c0_4 = arith.constant 0 : index
    %3 = vector.load %arg3[%c0_3, %c0_4] : memref<24x1xf32, #tpu.memory_space<vmem>>, vector<24x1xf32>
    %4 = vector.broadcast %3 : vector<24x1xf32> to vector<24x128xf32>
    %5 = arith.addf %2, %4 : vector<24x128xf32>
    %cst_5 = arith.constant 0.000000e+00 : f32
    %6 = vector.broadcast %cst_5 : f32 to vector<24x128xf32>
    %7 = arith.maximumf %5, %6 : vector<24x128xf32>
    %c0_6 = arith.constant 0 : index
    %c0_7 = arith.constant 0 : index
    %8 = vector.load %arg4[%c0_6, %c0_7] : memref<36x24xf32, #tpu.memory_space<vmem>>, vector<36x24xf32>
    %cst_8 = arith.constant dense<0.000000e+00> : vector<36x128xf32>
    %9 = tpu.matmul %8, %7, %cst_8 {dimension_numbers = #tpu.dot_dimension_numbers<[1], [0], [0], [1], [0, 0, 1, 1], [], []>} : vector<36x24xf32>, vector<24x128xf32>, vector<36x128xf32> -> vector<36x128xf32>
    %c0_9 = arith.constant 0 : index
    %c0_10 = arith.constant 0 : index
    %10 = vector.load %arg5[%c0_9, %c0_10] : memref<36x1xf32, #tpu.memory_space<vmem>>, vector<36x1xf32>
    %11 = vector.broadcast %10 : vector<36x1xf32> to vector<36x128xf32>
    %12 = arith.addf %9, %11 : vector<36x128xf32>
    %cst_11 = arith.constant 0.000000e+00 : f32
    %13 = vector.broadcast %cst_11 : f32 to vector<36x128xf32>
    %14 = arith.maximumf %12, %13 : vector<36x128xf32>
    %c0_12 = arith.constant 0 : index
    %c0_13 = arith.constant 0 : index
    %15 = vector.load %arg6[%c0_12, %c0_13] : memref<2x36xf32, #tpu.memory_space<vmem>>, vector<2x36xf32>
    %cst_14 = arith.constant dense<0.000000e+00> : vector<2x128xf32>
    %16 = tpu.matmul %15, %14, %cst_14 {dimension_numbers = #tpu.dot_dimension_numbers<[1], [0], [0], [1], [0, 0, 1, 1], [], []>} : vector<2x36xf32>, vector<36x128xf32>, vector<2x128xf32> -> vector<2x128xf32>
    %c0_15 = arith.constant 0 : index
    %c0_16 = arith.constant 0 : index
    %17 = vector.load %arg7[%c0_15, %c0_16] : memref<2x1xf32, #tpu.memory_space<vmem>>, vector<2x1xf32>
    %18 = vector.broadcast %17 : vector<2x1xf32> to vector<2x128xf32>
    %19 = arith.addf %16, %18 : vector<2x128xf32>
    %20 = vector.extract_strided_slice %19 {offsets = [0, 0], sizes = [1, 128], strides = [1, 1]} : vector<2x128xf32> to vector<1x128xf32>
    %21 = vector.extract_strided_slice %19 {offsets = [1, 0], sizes = [1, 128], strides = [1, 1]} : vector<2x128xf32> to vector<1x128xf32>
    %22 = arith.subf %20, %21 : vector<1x128xf32>
    %cst_17 = arith.constant 0.000000e+00 : f32
    %23 = vector.broadcast %cst_17 : f32 to vector<1x128xf32>
    %24 = arith.subf %23, %22 : vector<1x128xf32>
    %25 = math.exp %24 : vector<1x128xf32>
    %cst_18 = arith.constant 1.000000e+00 : f32
    %26 = vector.broadcast %cst_18 : f32 to vector<1x128xf32>
    %27 = arith.addf %26, %25 : vector<1x128xf32>
    %cst_19 = arith.constant 1.000000e+00 : f32
    %28 = vector.broadcast %cst_19 : f32 to vector<1x128xf32>
    %29 = arith.divf %28, %27 : vector<1x128xf32>
    %30 = math.exp %22 : vector<1x128xf32>
    %cst_20 = arith.constant 1.000000e+00 : f32
    %31 = vector.broadcast %cst_20 : f32 to vector<1x128xf32>
    %32 = arith.addf %31, %30 : vector<1x128xf32>
    %cst_21 = arith.constant 1.000000e+00 : f32
    %33 = vector.broadcast %cst_21 : f32 to vector<1x128xf32>
    %34 = arith.divf %33, %32 : vector<1x128xf32>
    %c0_22 = arith.constant 0 : index
    %c0_23 = arith.constant 0 : index
    %35 = vector.load %arg8[%c0_22, %c0_23] : memref<2x128xf32, #tpu.memory_space<vmem>>, vector<1x128xf32>
    tpu.vector_store %arg8[%c0_22, %c0_23], %29 {strides = array<i32>} : memref<2x128xf32, #tpu.memory_space<vmem>>, vector<1x128xf32>,
    %c1 = arith.constant 1 : index
    %c0_24 = arith.constant 0 : index
    %36 = vector.load %arg8[%c1, %c0_24] : memref<2x128xf32, #tpu.memory_space<vmem>>, vector<1x128xf32>
    tpu.vector_store %arg8[%c1, %c0_24], %34 {strides = array<i32>} : memref<2x128xf32, #tpu.memory_space<vmem>>, vector<1x128xf32>,
    return
  }
  func.func @transform_0(%arg0: i32) -> (i32, i32) {
    %c0_i32 = arith.constant 0 : i32
    %c0_i32_0 = arith.constant 0 : i32
    return %c0_i32, %arg0 : i32, i32
  }
  func.func @transform_1(%arg0: i32) -> (i32, i32) {
    %c0_i32 = arith.constant 0 : i32
    %c0_i32_0 = arith.constant 0 : i32
    %c0_i32_1 = arith.constant 0 : i32
    return %c0_i32, %c0_i32_0 : i32, i32
  }
  func.func @transform_2(%arg0: i32) -> (i32, i32) {
    %c0_i32 = arith.constant 0 : i32
    %c0_i32_0 = arith.constant 0 : i32
    %c0_i32_1 = arith.constant 0 : i32
    return %c0_i32, %c0_i32_0 : i32, i32
  }
  func.func @transform_3(%arg0: i32) -> (i32, i32) {
    %c0_i32 = arith.constant 0 : i32
    %c0_i32_0 = arith.constant 0 : i32
    %c0_i32_1 = arith.constant 0 : i32
    return %c0_i32, %c0_i32_0 : i32, i32
  }
  func.func @transform_4(%arg0: i32) -> (i32, i32) {
    %c0_i32 = arith.constant 0 : i32
    %c0_i32_0 = arith.constant 0 : i32
    %c0_i32_1 = arith.constant 0 : i32
    return %c0_i32, %c0_i32_0 : i32, i32
  }
  func.func @transform_5(%arg0: i32) -> (i32, i32) {
    %c0_i32 = arith.constant 0 : i32
    %c0_i32_0 = arith.constant 0 : i32
    %c0_i32_1 = arith.constant 0 : i32
    return %c0_i32, %c0_i32_0 : i32, i32
  }
  func.func @transform_6(%arg0: i32) -> (i32, i32) {
    %c0_i32 = arith.constant 0 : i32
    %c0_i32_0 = arith.constant 0 : i32
    %c0_i32_1 = arith.constant 0 : i32
    return %c0_i32, %c0_i32_0 : i32, i32
  }
  func.func @transform_7(%arg0: i32) -> (i32, i32) {
    %c0_i32 = arith.constant 0 : i32
    %c0_i32_0 = arith.constant 0 : i32
    return %c0_i32, %arg0 : i32, i32
  }
}

</mosaic_0001>

<llo_original>
// kernel: tpu_custom_call.1
$region0: #{tpu_custom_call.1}
  #allocation0 [shape = 'u32[]', space=smem, size = 0x4, offset = 0x4, fixed_abs, tag = 'smem constant byte address 0x4 - core index']
  #allocation1 [shape = 'u32[144,128]{1,0:T(1,128)}', space=vmem, size = 0x12000, scoped, tag = 'internal scratch']
  %s0 = inlined_call_operand.vmem [shape: f32[4,128], index: 0, kind: input, shape index: {}]
  %s1 = inlined_call_operand.vmem [shape: f32[24,4], index: 1, kind: input, shape index: {}]
  %s2 = inlined_call_operand.vmem [shape: f32[24,1], index: 2, kind: input, shape index: {}]
  %s3 = inlined_call_operand.vmem [shape: f32[36,24], index: 3, kind: input, shape index: {}]
  %s4 = inlined_call_operand.vmem [shape: f32[36,1], index: 4, kind: input, shape index: {}]
  %s5 = inlined_call_operand.vmem [shape: f32[2,36], index: 5, kind: input, shape index: {}]
  %s6 = inlined_call_operand.vmem [shape: f32[2,1], index: 6, kind: input, shape index: {}]
  %s7 = inlined_call_operand.hbm [shape: f32[2,128], index: 7, kind: output, shape index: {}]
  %s8 = sld [smem:[#allocation0]]
  $region38: #{tpu_custom_call.1} parent=0
    _
  %s10 = ssub.s32 1, %s8
  %s11 = scalar_select 0, %s10, %s8
  $region1: #{tpu_custom_call.1} parent=0
    #allocation2 [shape = 'u8[1024]{0}', space=vmem, size = 0x400, scoped, tag = 'output window, operand 0, single buffered']
    #allocation3 [shape = 's32[1]{0}', space=sflag, size = 0x4, scoped, tag = 'scoped memory for tpu_custom_call.1']
    %12 = vsyncpa [#allocation3], 0
    // Predicated region
    $region2: #{tpu_custom_call.1} parent=1 // pred_check
      _
    $region3: #{tpu_custom_call.1} parent=1 // pred_check_branch
      %14 = sbr.rel (0) target = $region5
    $region4: #{tpu_custom_call.1} parent=1 // pred_region
      _
    $region5: #{tpu_custom_call.1} parent=1 // pred_fallthru
      _
    // Predicated region
    $region6: #{tpu_custom_call.1} parent=1 // pred_check
      _
    $region7: #{tpu_custom_call.1} parent=1 // pred_check_branch
      %16 = sbr.rel (0) target = $region9
    $region8: #{tpu_custom_call.1} parent=1 // pred_region
      _
    $region9: #{tpu_custom_call.1} parent=1 // pred_fallthru
      _
    // Predicated region
    $region10: #{tpu_custom_call.1} parent=1 // pred_check
      _
    $region11: #{tpu_custom_call.1} parent=1 // pred_check_branch
      %18 = sbr.rel (0) target = $region13
    $region12: #{tpu_custom_call.1} parent=1 // pred_region
      _
    $region13: #{tpu_custom_call.1} parent=1 // pred_fallthru
      _
    // Predicated region
    $region14: #{tpu_custom_call.1} parent=1 // pred_check
      _
    $region15: #{tpu_custom_call.1} parent=1 // pred_check_branch
      %20 = sbr.rel (0) target = $region17
    $region16: #{tpu_custom_call.1} parent=1 // pred_region
      _
    $region17: #{tpu_custom_call.1} parent=1 // pred_fallthru
      _
    // Predicated region
    $region18: #{tpu_custom_call.1} parent=1 // pred_check
      _
    $region19: #{tpu_custom_call.1} parent=1 // pred_check_branch
      %22 = sbr.rel (0) target = $region21
    $region20: #{tpu_custom_call.1} parent=1 // pred_region
      _
    $region21: #{tpu_custom_call.1} parent=1 // pred_fallthru
      _
    // Predicated region
    $region22: #{tpu_custom_call.1} parent=1 // pred_check
      _
    $region23: #{tpu_custom_call.1} parent=1 // pred_check_branch
      %24 = sbr.rel (0) target = $region25
    $region24: #{tpu_custom_call.1} parent=1 // pred_region
      _
    $region25: #{tpu_custom_call.1} parent=1 // pred_fallthru
      _
    // Predicated region
    $region26: #{tpu_custom_call.1} parent=1 // pred_check
      _
    $region27: #{tpu_custom_call.1} parent=1 // pred_check_branch
      %26 = sbr.rel (0) target = $region29
    $region28: #{tpu_custom_call.1} parent=1 // pred_region
      _
    $region29: #{tpu_custom_call.1} parent=1 // pred_fallthru
      _
    %v27 = vld [vmem:[%s0] sm:$0xf]
    %v28 = vld [vmem:[%s1] sm:$0xff]
    %v29 = vld [vmem:[%s1 + $0x8] sm:$0xff]
    %v30 = vld [vmem:[%s1 + $0x10] sm:$0xff]
    %v31 = vld [vmem:[%s2] sm:$0xff]
    %v32 = vld [vmem:[%s2 + $0x8] sm:$0xff]
    %v33 = vld [vmem:[%s2 + $0x10] sm:$0xff]
    %35 = vset.pattern.permute.xlu0 0
    %36 = vperm.xlu0 %35, %v31
    %v37 = vpop.permute.xlu0 %36
    %40 = vset.pattern.permute.xlu0 0
    %41 = vperm.xlu0 %40, %v32
    %v42 = vpop.permute.xlu0 %41
    %45 = vset.pattern.permute.xlu0 0
    %46 = vperm.xlu0 %45, %v33
    %v47 = vpop.permute.xlu0 %46
    %vm49 = vcmask 31744
    %v51 = vsel %vm49, %v28, 0
    %v54 = vsel %vm49, %v29, 0
    %v57 = vsel %vm49, %v30, 0
    %vm59 = vcmask 1043456
    %v61 = vsel %vm59, %v27, 0
    %63 = vmatprep.subr.mxu0 0.0
    %64 = vmatpush1.msra.mxu0 %v61
    %65 = vmatprep.subr.mxu0 0.0
    %66 = vmatpush1.msra.mxu0 0.0
    %67 = vmatprep.subr.mxu0 0.0
    %68 = vmatpush1.msra.mxu0 0.0
    %69 = vmatprep.subr.mxu0 0.0
    %70 = vmatpush1.msra.mxu0 0.0
    %71 = vmatprep.subr.mxu0 0.0
    %72 = vmatpush1.msra.mxu0 0.0
    %73 = vmatprep.subr.mxu0 0.0
    %74 = vmatpush1.msra.mxu0 0.0
    %75 = vmatprep.subr.mxu0 0.0
    %76 = vmatpush1.msra.mxu0 0.0
    %77 = vmatprep.subr.mxu0 0.0
    %78 = vmatpush1.msra.mxu0 0.0
    %79 = vmatprep.subr.mxu0 0.0
    %80 = vmatpush1.msra.mxu0 0.0
    %81 = vmatprep.subr.mxu0 0.0
    %82 = vmatpush1.msra.mxu0 0.0
    %83 = vmatprep.subr.mxu0 0.0
    %84 = vmatpush1.msra.mxu0 0.0
    %85 = vmatprep.subr.mxu0 0.0
    %86 = vmatpush1.msra.mxu0 0.0
    %87 = vmatprep.subr.mxu0 0.0
    %88 = vmatpush1.msra.mxu0 0.0
    %89 = vmatprep.subr.mxu0 0.0
    %90 = vmatpush1.msra.mxu0 0.0
    %91 = vmatprep.subr.mxu0 0.0
    %92 = vmatpush1.msra.mxu0 0.0
    %93 = vmatprep.subr.mxu0 0.0
    %94 = vmatpush1.msra.mxu0 0.0
    %95 = vmatprep.subr.mxu0 0.0
    %96 = vmatpush1.msra.mxu0 0.0
    %97 = vmatprep.subr.mxu0 0.0
    %98 = vmatpush1.msra.mxu0 0.0
    %99 = vmatprep.subr.mxu0 0.0
    %100 = vmatpush1.msra.mxu0 0.0
    %101 = vmatprep.subr.mxu0 0.0
    %102 = vmatpush1.msra.mxu0 0.0
    %103 = vmatprep.subr.mxu0 0.0
    %104 = vmatpush1.msra.mxu0 0.0
    %105 = vmatprep.subr.mxu0 0.0
    %106 = vmatpush1.msra.mxu0 0.0
    %107 = vmatprep.subr.mxu0 0.0
    %108 = vmatpush1.msra.mxu0 0.0
    %109 = vmatprep.subr.mxu0 0.0
    %110 = vmatpush1.msra.mxu0 0.0
    %111 = vmatprep.subr.mxu0 0.0
    %112 = vmatpush1.msra.mxu0 0.0
    %113 = vmatprep.subr.mxu0 0.0
    %114 = vmatpush1.msra.mxu0 0.0
    %115 = vmatprep.subr.mxu0 0.0
    %116 = vmatpush1.msra.mxu0 0.0
    %117 = vmatprep.subr.mxu0 0.0
    %118 = vmatpush1.msra.mxu0 0.0
    %119 = vmatprep.subr.mxu0 0.0
    %120 = vmatpush1.msra.mxu0 0.0
    %121 = vmatprep.subr.mxu0 0.0
    %122 = vmatpush1.msra.mxu0 0.0
    %123 = vmatprep.subr.mxu0 0.0
    %124 = vmatpush1.msra.mxu0 0.0
    %125 = vmatprep.subr.mxu0 0.0
    %126 = vmatpush1.msra.mxu0 0.0
    %127 = vmatprep.mubr.f32.mxu0 0.0
    %128 = vmatmul.mubr.f32.gmra.mrb[0].mxu0 %v51
    %v129 = vpop.f32.mrb[0].mxu0
    %v130 = vadd.f32 %v37, %v129
    %v131 = vpop.f32.mrb[0].mxu0
    %132 = vmatprep.mubr.f32.mxu0 0.0
    %133 = vmatmul.mubr.f32.gmra.mrb[0].mxu0 %v54
    %v134 = vpop.f32.mrb[0].mxu0
    %v135 = vadd.f32 %v42, %v134
    %v136 = vpop.f32.mrb[0].mxu0
    %137 = vmatprep.mubr.f32.mxu0 0.0
    %138 = vmatmul.mubr.f32.gmra.mrb[0].mxu0 %v57
    %v139 = vpop.f32.mrb[0].mxu0
    %v140 = vadd.f32 %v47, %v139
    %v141 = vpop.f32.mrb[0].mxu0
    %142 = vdwg.mxu0
    %v143 = vmax.f32 %v130, 0.0
    %v144 = vmax.f32 %v135, 0.0
    %v145 = vmax.f32 %v140, 0.0
    %v146 = vld [vmem:[%s3] sm:$0xff]
    %v147 = vld [vmem:[%s3 + $0x8] sm:$0xff]
    %v148 = vld [vmem:[%s3 + $0x10] sm:$0xff]
    %v149 = vld [vmem:[%s3 + $0x18] sm:$0xff]
    %v150 = vld [vmem:[%s3 + $0x20] sm:$0xf]
    %v151 = vld [vmem:[%s4] sm:$0xff]
    %v152 = vld [vmem:[%s4 + $0x8] sm:$0xff]
    %v153 = vld [vmem:[%s4 + $0x10] sm:$0xff]
    %v154 = vld [vmem:[%s4 + $0x18] sm:$0xff]
    %v155 = vld [vmem:[%s4 + $0x20] sm:$0xf]
    %157 = vset.pattern.permute.xlu0 0
    %158 = vperm.xlu0 %157, %v151
    %v159 = vpop.permute.xlu0 %158
    %162 = vset.pattern.permute.xlu0 0
    %163 = vperm.xlu0 %162, %v152
    %v164 = vpop.permute.xlu0 %163
    %167 = vset.pattern.permute.xlu0 0
    %168 = vperm.xlu0 %167, %v153
    %v169 = vpop.permute.xlu0 %168
    %172 = vset.pattern.permute.xlu0 0
    %173 = vperm.xlu0 %172, %v154
    %v174 = vpop.permute.xlu0 %173
    %177 = vset.pattern.permute.xlu0 0
    %178 = vperm.xlu0 %177, %v155
    %v179 = vpop.permute.xlu0 %178
    %vm181 = vcmask 195584
    %v183 = vsel %vm181, %v146, 0
    %v186 = vsel %vm181, %v147, 0
    %v189 = vsel %vm181, %v148, 0
    %v192 = vsel %vm181, %v149, 0
    %v195 = vsel %vm181, %v150, 0
    %197 = vmatprep.subr.mxu0 0.0
    %198 = vmatpush1.msra.mxu0 %v143
    %199 = vmatprep.subr.mxu0 0.0
    %200 = vmatpush1.msra.mxu0 %v144
    %201 = vmatprep.subr.mxu0 0.0
    %202 = vmatpush1.msra.mxu0 %v145
    %203 = vmatprep.subr.mxu0 0.0
    %204 = vmatpush1.msra.mxu0 0.0
    %205 = vmatprep.subr.mxu0 0.0
    %206 = vmatpush1.msra.mxu0 0.0
    %207 = vmatprep.subr.mxu0 0.0
    %208 = vmatpush1.msra.mxu0 0.0
    %209 = vmatprep.subr.mxu0 0.0
    %210 = vmatpush1.msra.mxu0 0.0
    %211 = vmatprep.subr.mxu0 0.0
    %212 = vmatpush1.msra.mxu0 0.0
    %213 = vmatprep.subr.mxu0 0.0
    %214 = vmatpush1.msra.mxu0 0.0
    %215 = vmatprep.subr.mxu0 0.0
    %216 = vmatpush1.msra.mxu0 0.0
    %217 = vmatprep.subr.mxu0 0.0
    %218 = vmatpush1.msra.mxu0 0.0
    %219 = vmatprep.subr.mxu0 0.0
    %220 = vmatpush1.msra.mxu0 0.0
    %221 = vmatprep.subr.mxu0 0.0
    %222 = vmatpush1.msra.mxu0 0.0
    %223 = vmatprep.subr.mxu0 0.0
    %224 = vmatpush1.msra.mxu0 0.0
    %225 = vmatprep.subr.mxu0 0.0
    %226 = vmatpush1.msra.mxu0 0.0
    %227 = vmatprep.subr.mxu0 0.0
    %228 = vmatpush1.msra.mxu0 0.0
    %229 = vmatprep.subr.mxu0 0.0
    %230 = vmatpush1.msra.mxu0 0.0
    %231 = vmatprep.subr.mxu0 0.0
    %232 = vmatpush1.msra.mxu0 0.0
    %233 = vmatprep.subr.mxu0 0.0
    %234 = vmatpush1.msra.mxu0 0.0
    %235 = vmatprep.subr.mxu0 0.0
    %236 = vmatpush1.msra.mxu0 0.0
    %237 = vmatprep.subr.mxu0 0.0
    %238 = vmatpush1.msra.mxu0 0.0
    %239 = vmatprep.subr.mxu0 0.0
    %240 = vmatpush1.msra.mxu0 0.0
    %241 = vmatprep.subr.mxu0 0.0
    %242 = vmatpush1.msra.mxu0 0.0
    %243 = vmatprep.subr.mxu0 0.0
    %244 = vmatpush1.msra.mxu0 0.0
    %245 = vmatprep.subr.mxu0 0.0
    %246 = vmatpush1.msra.mxu0 0.0
    %247 = vmatprep.subr.mxu0 0.0
    %248 = vmatpush1.msra.mxu0 0.0
    %249 = vmatprep.subr.mxu0 0.0
    %250 = vmatpush1.msra.mxu0 0.0
    %251 = vmatprep.subr.mxu0 0.0
    %252 = vmatpush1.msra.mxu0 0.0
    %253 = vmatprep.subr.mxu0 0.0
    %254 = vmatpush1.msra.mxu0 0.0
    %255 = vmatprep.subr.mxu0 0.0
    %256 = vmatpush1.msra.mxu0 0.0
    %257 = vmatprep.subr.mxu0 0.0
    %258 = vmatpush1.msra.mxu0 0.0
    %259 = vmatprep.subr.mxu0 0.0
    %260 = vmatpush1.msra.mxu0 0.0
    %261 = vmatprep.mubr.f32.mxu0 0.0
    %262 = vmatmul.mubr.f32.gmra.mrb[0].mxu0 %v183
    %v263 = vpop.f32.mrb[0].mxu0
    %v264 = vadd.f32 %v159, %v263
    %v265 = vpop.f32.mrb[0].mxu0
    %266 = vmatprep.mubr.f32.mxu0 0.0
    %267 = vmatmul.mubr.f32.gmra.mrb[0].mxu0 %v186
    %v268 = vpop.f32.mrb[0].mxu0
    %v269 = vadd.f32 %v164, %v268
    %v270 = vpop.f32.mrb[0].mxu0
    %271 = vmatprep.mubr.f32.mxu0 0.0
    %272 = vmatmul.mubr.f32.gmra.mrb[0].mxu0 %v189
    %v273 = vpop.f32.mrb[0].mxu0
    %v274 = vadd.f32 %v169, %v273
    %v275 = vpop.f32.mrb[0].mxu0
    %276 = vmatprep.mubr.f32.mxu0 0.0
    %277 = vmatmul.mubr.f32.gmra.mrb[0].mxu0 %v192
    %v278 = vpop.f32.mrb[0].mxu0
    %v279 = vadd.f32 %v174, %v278
    %v280 = vpop.f32.mrb[0].mxu0
    %281 = vmatprep.mubr.f32.mxu0 0.0
    %282 = vmatmul.mubr.f32.gmra.mrb[0].mxu0 %v195
    %v283 = vpop.f32.mrb[0].mxu0
    %v284 = vadd.f32 %v179, %v283
    %v285 = vpop.f32.mrb[0].mxu0
    %286 = vdwg.mxu0
    %v287 = vmax.f32 %v264, 0.0
    %v288 = vmax.f32 %v269, 0.0
    %v289 = vmax.f32 %v274, 0.0
    %v290 = vmax.f32 %v279, 0.0
    %v291 = vmax.f32 %v284, 0.0
    %v292 = vld [vmem:[%s5] sm:$0x3]
    %v293 = vld [vmem:[%s6] sm:$0x3]
    %295 = vset.pattern.permute.xlu0 0
    %296 = vperm.xlu0 %295, %v293
    %v297 = vpop.permute.xlu0 %296
    %vm299 = vcmask 293888
    %v301 = vsel %vm299, %v292, 0
    %v304 = vsel %vm59, %v291, 0
    %306 = vmatprep.subr.mxu0 0.0
    %307 = vmatpush1.msra.mxu0 %v287
    %308 = vmatprep.subr.mxu0 0.0
    %309 = vmatpush1.msra.mxu0 %v288
    %310 = vmatprep.subr.mxu0 0.0
    %311 = vmatpush1.msra.mxu0 %v289
    %312 = vmatprep.subr.mxu0 0.0
    %313 = vmatpush1.msra.mxu0 %v290
    %314 = vmatprep.subr.mxu0 0.0
    %315 = vmatpush1.msra.mxu0 %v304
    %316 = vmatprep.subr.mxu0 0.0
    %317 = vmatpush1.msra.mxu0 0.0
    %318 = vmatprep.subr.mxu0 0.0
    %319 = vmatpush1.msra.mxu0 0.0
    %320 = vmatprep.subr.mxu0 0.0
    %321 = vmatpush1.msra.mxu0 0.0
    %322 = vmatprep.subr.mxu0 0.0
    %323 = vmatpush1.msra.mxu0 0.0
    %324 = vmatprep.subr.mxu0 0.0
    %325 = vmatpush1.msra.mxu0 0.0
    %326 = vmatprep.subr.mxu0 0.0
    %327 = vmatpush1.msra.mxu0 0.0
    %328 = vmatprep.subr.mxu0 0.0
    %329 = vmatpush1.msra.mxu0 0.0
    %330 = vmatprep.subr.mxu0 0.0
    %331 = vmatpush1.msra.mxu0 0.0
    %332 = vmatprep.subr.mxu0 0.0
    %333 = vmatpush1.msra.mxu0 0.0
    %334 = vmatprep.subr.mxu0 0.0
    %335 = vmatpush1.msra.mxu0 0.0
    %336 = vmatprep.subr.mxu0 0.0
    %337 = vmatpush1.msra.mxu0 0.0
    %338 = vmatprep.subr.mxu0 0.0
    %339 = vmatpush1.msra.mxu0 0.0
    %340 = vmatprep.subr.mxu0 0.0
    %341 = vmatpush1.msra.mxu0 0.0
    %342 = vmatprep.subr.mxu0 0.0
    %343 = vmatpush1.msra.mxu0 0.0
    %344 = vmatprep.subr.mxu0 0.0
    %345 = vmatpush1.msra.mxu0 0.0
    %346 = vmatprep.subr.mxu0 0.0
    %347 = vmatpush1.msra.mxu0 0.0
    %348 = vmatprep.subr.mxu0 0.0
    %349 = vmatpush1.msra.mxu0 0.0
    %350 = vmatprep.subr.mxu0 0.0
    %351 = vmatpush1.msra.mxu0 0.0
    %352 = vmatprep.subr.mxu0 0.0
    %353 = vmatpush1.msra.mxu0 0.0
    %354 = vmatprep.subr.mxu0 0.0
    %355 = vmatpush1.msra.mxu0 0.0
    %356 = vmatprep.subr.mxu0 0.0
    %357 = vmatpush1.msra.mxu0 0.0
    %358 = vmatprep.subr.mxu0 0.0
    %359 = vmatpush1.msra.mxu0 0.0
    %360 = vmatprep.subr.mxu0 0.0
    %361 = vmatpush1.msra.mxu0 0.0
    %362 = vmatprep.subr.mxu0 0.0
    %363 = vmatpush1.msra.mxu0 0.0
    %364 = vmatprep.subr.mxu0 0.0
    %365 = vmatpush1.msra.mxu0 0.0
    %366 = vmatprep.subr.mxu0 0.0
    %367 = vmatpush1.msra.mxu0 0.0
    %368 = vmatprep.subr.mxu0 0.0
    %369 = vmatpush1.msra.mxu0 0.0
    %370 = vmatprep.mubr.f32.mxu0 0.0
    %371 = vmatmul.mubr.f32.gmra.mrb[0].mxu0 %v301
    %v372 = vpop.f32.mrb[0].mxu0
    %v373 = vadd.f32 %v297, %v372
    %v374 = vpop.f32.mrb[0].mxu0
    %375 = vdwg.mxu0
    %v377 = vrot.slane %v373, 1
    %v379 = vsub.f32 %v373, %v377
    %v380 = vsub.f32 0.0, %v379
    %v381 = vmul.f32 %v380, 1.442695
    %v382 = vpow.pop %v381
    %v383 = vadd.f32 %v382, 1.0
    %v384 = vrcp.pop %v383
    %v385 = vmul.f32 1.0, %v384
    %v386 = vmul.f32 %v379, 1.442695
    %v387 = vpow.pop %v386
    %v388 = vadd.f32 %v387, 1.0
    %v389 = vrcp.pop %v388
    %v390 = vmul.f32 1.0, %v389
    %391 = vst [vmem:[#allocation2] sm:$0x1] %v385
    %392 = vst [vmem:[#allocation2 + $0x1] sm:$0x1] %v390
    // Predicated region
    $region30: #{tpu_custom_call.1} parent=1 // pred_check
      _
    $region31: #{tpu_custom_call.1} parent=1 // pred_check_branch
      %394 = sbr.rel (0) target = $region33
    $region32: #{tpu_custom_call.1} parent=1 // pred_region
      %s396 = ssub.s32 32, 32
      %397 = vsyncadd [#allocation3], %s396
      %s399 = sshll.u32 [#allocation2], 4
      %s400 = int_to_ptr.vmem [resolvable:$true] %s399
      %402 = dma.vmem_to_hbm [thread:$0]  %s400, 32, %s7, [#allocation3]
    $region33: #{tpu_custom_call.1} parent=1 // pred_fallthru
      _
    // Predicated region
    $region34: #{tpu_custom_call.1} parent=1 // pred_check
      _
    $region35: #{tpu_custom_call.1} parent=1 // pred_check_branch
      %404 = sbr.rel (0) target = $region37
    $region36: #{tpu_custom_call.1} parent=1 // pred_region
      %405 = dma.done [#allocation3], 32
    $region37: #{tpu_custom_call.1} parent=1 // pred_fallthru
      _
    %406 = vsyncpa [#allocation3], 1

</llo_original>
